<compile_context>
chip_gen: v5e
topology: v5e:2x2
jax: 0.10.0
libtpu: 0.0.40
codegen_flags: <defaults>
</compile_context>

<pallas_src>
import functools

import jax
import jax.numpy as jnp
from jax import lax
from jax.experimental import pallas as pl
from jax.experimental.pallas import tpu as pltpu


# ----------------------------------------------------------------------------
# Tiny one-time probe: determine pltpu.roll's rotation direction so the tap
# shifts below are correct regardless of convention.  Returns r such that
#   pltpu.roll(x, (r * s) % n, axis)[..., f] == x[..., f + s]   (pre-masking).
# ----------------------------------------------------------------------------
@functools.lru_cache(maxsize=None)
def _roll_sign() -> int:
    def probe(x_ref, o_ref):
        o_ref[...] = pltpu.roll(x_ref[...], 1, axis=1)

    x = jnp.broadcast_to(lax.iota(jnp.float32, 128), (8, 128))
    y = pl.pallas_call(
        probe, out_shape=jax.ShapeDtypeStruct((8, 128), jnp.float32))(x)
    # jnp.roll convention: out[0] == x[-1] == 127.
    return -1 if float(y[0, 0]) == 127.0 else 1


# ----------------------------------------------------------------------------
# Kernel: one batch element per grid step, layout (C, H*W) with H*W on lanes.
# ----------------------------------------------------------------------------
def _inv_res_kernel(*refs, H, W, Cin, Chid, Cout, stride, use_res, has_expand,
                    roll_sign):
    it = iter(refs)
    x_ref = next(it)
    if has_expand:
        w1_ref, b1_ref = next(it), next(it)
    wdw_ref, bdw_ref = next(it), next(it)
    w2_ref, b2_ref = next(it), next(it)
    sel_ref = next(it) if stride != 1 else None
    o_ref = next(it)

    HW = H * W
    x = x_ref[0]  # (Cin, H*W) f32, lane-dense

    # ---- 1x1 expand conv (+folded BN) + ReLU6 : bf16 MXU matmul, f32 acc ----
    if has_expand:
        t = jnp.dot(w1_ref[...], x.astype(jnp.bfloat16),
                    preferred_element_type=jnp.float32)            # (Chid, HW)
        t = jnp.clip(t + b1_ref[...], 0.0, 6.0)
    else:
        t = x                                                       # Chid == Cin

    # ---- depthwise 3x3, padding=1 (+folded BN) + ReLU6 ----------------------
    # Each tap is a lane-roll of the fused H*W axis (XLU) + a border mask;
    # accumulation is plain f32 VPU multiply-adds.  Masks are built from a
    # single (1, HW) lane row and sublane-broadcast inside the select.
    col = lax.broadcasted_iota(jnp.int32, (1, HW), 1)
    hh = col // W
    ww = col - hh * W
    wdw = wdw_ref[...]                                   # (Chid, 9) f32
    acc = jnp.broadcast_to(bdw_ref[...], (Chid, HW))     # folded BN bias
    for dh in range(3):
        for dw in range(3):
            s = (dh - 1) * W + (dw - 1)                  # tap[f] = t[f + s]
            if s == 0:
                tap = t
            else:
                tap = pltpu.roll(t, (roll_sign * s) % HW, axis=1)
            valid = ((hh >= 1 - dh) & (hh <= H - dh) &
                     (ww >= 1 - dw) & (ww <= W - dw))    # (1, HW) bool
            k = dh * 3 + dw
            acc = acc + jnp.where(valid, tap, 0.0) * wdw[:, k:k + 1]
    acc = jnp.clip(acc, 0.0, 6.0)

    # ---- stride 2: pick the strided lanes with a 0/1 selection matmul -------
    # bf16 operands are exact here (selection picks single bf16 values), so the
    # result is identical to an f32 selection while using the fast MXU path.
    acc = acc.astype(jnp.bfloat16)                        # also the proj operand dtype
    if stride != 1:
        acc = jnp.dot(acc, sel_ref[...],
                      preferred_element_type=jnp.float32).astype(jnp.bfloat16)

    # ---- 1x1 project conv (+folded BN) : bf16 MXU matmul, f32 acc -----------
    y = jnp.dot(w2_ref[...], acc,
                preferred_element_type=jnp.float32) + b2_ref[...]   # (Cout, HoWo)
    if use_res:
        y = y + x
    o_ref[0] = y.astype(o_ref.dtype)


# ----------------------------------------------------------------------------
# Parameter handling (PyTorch-style conv + BatchNorm, BN folded for inference).
# ----------------------------------------------------------------------------
def _fold_bn(gamma, beta, mean, var, eps=1e-5):
    scale = gamma / jnp.sqrt(var + eps)
    bias = beta - mean * scale
    return scale, bias


def init_params(key, in_channels, out_channels, expand_ratio):
    hidden = in_channels * expand_ratio
    ks = jax.random.split(key, 15)

    def bn(k0, k1, k2, k3, c):
        return (0.5 + jax.random.uniform(k0, (c,), jnp.float32),
                0.1 * jax.random.normal(k1, (c,), jnp.float32),
                0.1 * jax.random.normal(k2, (c,), jnp.float32),
                0.5 + jax.random.uniform(k3, (c,), jnp.float32))

    p = {}
    if expand_ratio != 1:
        # torch weight (hidden, Cin, 1, 1) -> stored (hidden, Cin)
        p["w1"] = 0.1 * jax.random.normal(ks[0], (hidden, in_channels), jnp.float32)
        p["bn1"] = bn(ks[1], ks[2], ks[3], ks[4], hidden)
    # torch depthwise weight (hidden, 1, 3, 3) -> stored (hidden, 3, 3)
    p["wdw"] = 0.1 * jax.random.normal(ks[5], (hidden, 3, 3), jnp.float32)
    p["bn2"] = bn(ks[6], ks[7], ks[8], ks[9], hidden)
    # torch weight (Cout, hidden, 1, 1) -> stored (Cout, hidden)
    p["w2"] = 0.1 * jax.random.normal(ks[10], (out_channels, hidden), jnp.float32)
    p["bn3"] = bn(ks[11], ks[12], ks[13], ks[14], out_channels)
    return p


def fold_params(params, has_expand):
    f = {}
    if has_expand:
        s1, b1 = _fold_bn(*params["bn1"])
        f["w1"] = (params["w1"] * s1[:, None]).astype(jnp.bfloat16)   # (Chid, Cin)
        f["b1"] = b1[:, None].astype(jnp.float32)                     # (Chid, 1)
    s2, b2 = _fold_bn(*params["bn2"])
    hidden = params["wdw"].shape[0]
    f["wdw"] = (params["wdw"] * s2[:, None, None]).reshape(hidden, 9)  # (Chid, 9) f32
    f["bdw"] = b2[:, None].astype(jnp.float32)                         # (Chid, 1)
    s3, b3 = _fold_bn(*params["bn3"])
    f["w2"] = (params["w2"] * s3[:, None]).astype(jnp.bfloat16)        # (Cout, Chid)
    f["b2"] = b3[:, None].astype(jnp.float32)                          # (Cout, 1)
    return f


def _vmem_budget(Cin, Chid, Cout, HW, HoWo, stride):
    f32, bf16 = 4, 2
    io = 2 * Cin * HW * f32 + 2 * Cout * HoWo * f32              # double-buffered blocks
    w = 2 * (Chid * Cin * bf16 + Cout * Chid * bf16 + Chid * 9 * f32
             + (2 * Chid + Cout) * f32)
    sel = 2 * HW * HoWo * bf16 if stride != 1 else 0
    live = 8 * Chid * HW * f32                                    # t, acc, taps, temps
    total = io + w + sel + live
    return int(min(max(2 * total, 8 << 20), 64 << 20))


# ----------------------------------------------------------------------------
# Wrapper: PyTorch NCHW in, NCHW out (no transposes anywhere, only free reshapes).
# ----------------------------------------------------------------------------
def inverted_residual(x_nchw, params, *, in_channels, out_channels, stride,
                      expand_ratio):
    N, Cin, H, W = x_nchw.shape
    assert Cin == in_channels
    has_expand = expand_ratio != 1
    Chid = in_channels * expand_ratio
    Cout = out_channels
    Ho = (H - 1) // stride + 1
    Wo = (W - 1) // stride + 1
    HW, HoWo = H * W, Ho * Wo
    use_res = (stride == 1 and in_channels == out_channels)

    f = fold_params(params, has_expand)
    x = x_nchw.reshape(N, Cin, HW)          # contiguous view: C on sublanes, H*W on lanes

    in_specs = [pl.BlockSpec((1, Cin, HW), lambda n: (n, 0, 0))]
    args = [x]
    if has_expand:
        in_specs += [pl.BlockSpec((Chid, Cin), lambda n: (0, 0)),
                     pl.BlockSpec((Chid, 1), lambda n: (0, 0))]
        args += [f["w1"], f["b1"]]
    in_specs += [pl.BlockSpec((Chid, 9), lambda n: (0, 0)),
                 pl.BlockSpec((Chid, 1), lambda n: (0, 0)),
                 pl.BlockSpec((Cout, Chid), lambda n: (0, 0)),
                 pl.BlockSpec((Cout, 1), lambda n: (0, 0))]
    args += [f["wdw"], f["bdw"], f["w2"], f["b2"]]
    if stride != 1:
        # 0/1 matrix picking the strided output positions from the fused H*W lanes.
        rows = (stride * jnp.arange(Ho))[:, None] * W + stride * jnp.arange(Wo)[None, :]
        sel = jnp.zeros((HW, HoWo), jnp.float32).at[
            rows.reshape(-1), jnp.arange(HoWo)].set(1.0).astype(jnp.bfloat16)
        in_specs += [pl.BlockSpec((HW, HoWo), lambda n: (0, 0))]
        args += [sel]

    kernel = functools.partial(
        _inv_res_kernel, H=H, W=W, Cin=Cin, Chid=Chid, Cout=Cout,
        stride=stride, use_res=use_res, has_expand=has_expand,
        roll_sign=_roll_sign())

    out = pl.pallas_call(
        kernel,
        out_shape=jax.ShapeDtypeStruct((N, Cout, HoWo), x.dtype),
        grid_spec=pltpu.PrefetchScalarGridSpec(
            num_scalar_prefetch=0,
            grid=(N,),
            in_specs=in_specs,
            out_specs=pl.BlockSpec((1, Cout, HoWo), lambda n: (n, 0, 0)),
        ),
        compiler_params=pltpu.CompilerParams(
            dimension_semantics=("parallel",),
            vmem_limit_bytes=_vmem_budget(Cin, Chid, Cout, HW, HoWo, stride)),
    )(*args)

    return out.reshape(N, Cout, Ho, Wo)     # still NCHW; reshape is free


# ----------------------------------------------------------------------------
# Pure-JAX reference (mirrors the kernel's bf16 matmul inputs / f32 accumulation).
# ----------------------------------------------------------------------------
def reference_forward(x_nchw, params, *, in_channels, out_channels, stride,
                      expand_ratio):
    has_expand = expand_ratio != 1
    Chid = in_channels * expand_ratio
    use_res = (stride == 1 and in_channels == out_channels)
    f = fold_params(params, has_expand)

    x = jnp.transpose(x_nchw, (0, 2, 3, 1))                 # NHWC, f32
    if has_expand:
        t = jnp.einsum("nhwc,kc->nhwk", x.astype(jnp.bfloat16), f["w1"],
                       preferred_element_type=jnp.float32)
        t = jnp.clip(t + f["b1"][:, 0], 0.0, 6.0)
    else:
        t = x
    wdw_hwio = f["wdw"].reshape(Chid, 3, 3).transpose(1, 2, 0).reshape(3, 3, 1, Chid)
    t = lax.conv_general_dilated(
        t, wdw_hwio, window_strides=(stride, stride), padding=((1, 1), (1, 1)),
        dimension_numbers=("NHWC", "HWIO", "NHWC"), feature_group_count=Chid)
    t = jnp.clip(t + f["bdw"][:, 0], 0.0, 6.0)
    y = jnp.einsum("nhwc,kc->nhwk", t.astype(jnp.bfloat16), f["w2"],
                   preferred_element_type=jnp.float32) + f["b2"][:, 0]
    if use_res:
        y = y + x
    return jnp.transpose(y, (0, 3, 1, 2))


if __name__ == "__main__":
    key = jax.random.PRNGKey(0)
    configs = [
        # (in_channels, out_channels, stride, expand_ratio, N, H, W)
        (4, 4, 1, 4, 2, 16, 16),   # residual path
        (4, 8, 2, 4, 2, 16, 16),   # strided downsample, no residual
        (8, 8, 1, 1, 2, 16, 16),   # expand_ratio == 1 (no expand conv)
    ]
    for (cin, cout, stride, er, N, H, W) in configs:
        key, kx, kp = jax.random.split(key, 3)
        x = jax.random.normal(kx, (N, cin, H, W), jnp.float32)
        params = init_params(kp, cin, cout, er)

        out = inverted_residual(x, params, in_channels=cin, out_channels=cout,
                                stride=stride, expand_ratio=er)
        out = jax.block_until_ready(out)

        ref = reference_forward(x, params, in_channels=cin, out_channels=cout,
                                stride=stride, expand_ratio=er)
        assert out.shape == ref.shape, ((cin, cout, stride, er), out.shape, ref.shape)
        err = float(jnp.max(jnp.abs(out - ref)))
        assert err < 1e-2, ((cin, cout, stride, er), err)

    print("KERNEL_OK")
</pallas_src>

<mosaic_0001>
module attributes {stable_mosaic.version = 11 : i64} {
  func.func @probe(%arg0: memref<8x128xf32, #tpu.memory_space<vmem>>, %arg1: memref<8x128xf32, #tpu.memory_space<vmem>>) attributes {dimension_semantics = [], scalar_prefetch = 0 : i64, scratch_operands = 0 : i64, tpu.core_type = #tpu.core_type<tc>} {
    %c0 = arith.constant 0 : index
    %c0_0 = arith.constant 0 : index
    %0 = vector.load %arg0[%c0, %c0_0] : memref<8x128xf32, #tpu.memory_space<vmem>>, vector<8x128xf32>
    %c1_i32 = arith.constant 1 : i32
    %1 = tpu.dynamic_rotate %0 by %c1_i32 dim 1 : vector<8x128xf32>, i32 -> vector<8x128xf32>
    %c0_1 = arith.constant 0 : index
    %c0_2 = arith.constant 0 : index
    %2 = vector.load %arg1[%c0_1, %c0_2] : memref<8x128xf32, #tpu.memory_space<vmem>>, vector<8x128xf32>
    tpu.vector_store %arg1[%c0_1, %c0_2], %1 {strides = array<i32>} : memref<8x128xf32, #tpu.memory_space<vmem>>, vector<8x128xf32>,
    return
  }
}

</mosaic_0001>

<llo_original>
// kernel: tpu_custom_call.1
$region0: #{tpu_custom_call.1}
  #allocation0 [shape = 'u32[]', space=smem, size = 0x4, offset = 0x4, fixed_abs, tag = 'smem constant byte address 0x4 - core index']
  #allocation1 [shape = 'u32[72,128]{1,0:T(1,128)}', space=vmem, size = 0x9000, scoped, tag = 'internal scratch']
  %s0 = inlined_call_operand.hbm [shape: f32[8,128], index: 0, kind: input, shape index: {}]
  %s1 = inlined_call_operand.hbm [shape: f32[8,128], index: 1, kind: output, shape index: {}]
  %s2 = sld [smem:[#allocation0]]
  $region18: #{tpu_custom_call.1} parent=0
    _
  %s4 = ssub.s32 1, %s2
  %s5 = scalar_select 0, %s4, %s2
  $region1: #{tpu_custom_call.1} parent=0
    #allocation2 [shape = 'u8[4096]{0}', space=vmem, size = 0x1000, scoped, tag = 'input window, operand 0, single buffered']
    #allocation3 [shape = 's32[1]{0}', space=sflag, size = 0x4, scoped, tag = 'scoped memory for tpu_custom_call.1']
    #allocation4 [shape = 's32[1]{0}', space=sflag, size = 0x4, scoped, tag = 'scoped memory for tpu_custom_call.1']
    #allocation5 [shape = 'u8[4096]{0}', space=vmem, size = 0x1000, scoped, tag = 'output window, operand 0, single buffered']
    %6 = vsyncpa [#allocation3], 0
    %7 = vsyncpa [#allocation4], 0
    // Predicated region
    $region2: #{tpu_custom_call.1} parent=1 // pred_check
      _
    $region3: #{tpu_custom_call.1} parent=1 // pred_check_branch
      %9 = sbr.rel (0) target = $region5
    $region4: #{tpu_custom_call.1} parent=1 // pred_region
      %11 = vsyncadd [#allocation3], 0
      %s13 = sshll.u32 %s0, 4
      %s14 = int_to_ptr.hbm [resolvable:$true] %s13
      %s15 = sshll.u32 [#allocation2], 4
      %s16 = int_to_ptr.vmem [resolvable:$true] %s15
      %18 = dma.hbm_to_vmem [thread:$0]  %s14, 128, %s16, [#allocation3]
    $region5: #{tpu_custom_call.1} parent=1 // pred_fallthru
      _
    // Predicated region
    $region6: #{tpu_custom_call.1} parent=1 // pred_check
      _
    $region7: #{tpu_custom_call.1} parent=1 // pred_check_branch
      %20 = sbr.rel (0) target = $region9
    $region8: #{tpu_custom_call.1} parent=1 // pred_region
      %22 = dma.done [#allocation3], 128
    $region9: #{tpu_custom_call.1} parent=1 // pred_fallthru
      _
    %v23 = vld [vmem:[#allocation2] sm:$0xff]
    %24 = vrot.lane.b32.xlu0 %v23, 1
    %v25 = vpop.permute.xlu0 %24
    %26 = vst [vmem:[#allocation5] sm:$0xff] %v25
    // Predicated region
    $region10: #{tpu_custom_call.1} parent=1 // pred_check
      _
    $region11: #{tpu_custom_call.1} parent=1 // pred_check_branch
      %28 = sbr.rel (0) target = $region13
    $region12: #{tpu_custom_call.1} parent=1 // pred_region
      %30 = vsyncadd [#allocation4], 0
      %s32 = sshll.u32 [#allocation5], 4
      %s33 = int_to_ptr.vmem [resolvable:$true] %s32
      %s34 = sshll.u32 %s1, 4
      %s35 = int_to_ptr.hbm [resolvable:$true] %s34
      %37 = dma.vmem_to_hbm [thread:$0]  %s33, 128, %s35, [#allocation4]
    $region13: #{tpu_custom_call.1} parent=1 // pred_fallthru
      _
    // Predicated region
    $region14: #{tpu_custom_call.1} parent=1 // pred_check
      _
    $region15: #{tpu_custom_call.1} parent=1 // pred_check_branch
      %39 = sbr.rel (0) target = $region17
    $region16: #{tpu_custom_call.1} parent=1 // pred_region
      %41 = dma.done [#allocation4], 128
    $region17: #{tpu_custom_call.1} parent=1 // pred_fallthru
      _
    %42 = vsyncpa [#allocation3], 1
    %43 = vsyncpa [#allocation4], 1

</llo_original>
